<compile_context>
chip_gen: v5e
topology: v5e:2x2
jax: 0.10.0
libtpu: 0.0.40
codegen_flags: <defaults>
</compile_context>

<pallas_src>
import jax
import jax.numpy as jnp
from jax.experimental import pallas as pl
from jax.experimental.pallas import tpu as pltpu


def rbm_kernel(v_ref, w_ref, wt_ref, bh_ref, bv_ref, out_ref):
    # bf16 operands into the MXU, f32 accumulation / activations.
    v = v_ref[...].astype(jnp.bfloat16)

    # h = sigmoid(v @ W + b_h)
    h_lin = jnp.dot(v, w_ref[...], preferred_element_type=jnp.float32) + bh_ref[...]
    h = 0.5 * jnp.tanh(0.5 * h_lin) + 0.5          # sigmoid via EUP tanh

    # v' = sigmoid(h @ W.T + b_v); W.T is a separate resident bf16 operand,
    # so this is a plain MXU dot (no in-kernel transpose).
    v_lin = jnp.dot(h.astype(jnp.bfloat16), wt_ref[...],
                    preferred_element_type=jnp.float32) + bv_ref[...]
    out_ref[...] = (0.5 * jnp.tanh(0.5 * v_lin) + 0.5).astype(out_ref.dtype)


def rbm_forward(v, W, b_h, b_v, *, block_m: int = 256):
    """RBM forward: sigmoid(sigmoid(v@W + b_h) @ W.T + b_v)."""
    B, n_visible = v.shape
    n_hidden = W.shape[1]

    # ---- lane-dense padding of the feature dims (multiples of 128). Exact:
    # zero-padded visible features hit zero rows of W; zero-padded hidden
    # features become sigmoid(0)=0.5 but hit zero rows of W.T -> contribute 0.
    nv_p = 128 * pl.cdiv(n_visible, 128)
    nh_p = 128 * pl.cdiv(n_hidden, 128)

    # ---- batch tile: pad only to a multiple of 8 for small batches (no 16x
    # waste at B=8); split into >= 2 balanced tiles when big enough so v7x
    # megacore sharding engages; cap at block_m for large batches.
    b8 = 8 * pl.cdiv(B, 8)
    if b8 <= 128:
        tm = b8
    elif b8 <= 2 * block_m:
        tm = 8 * pl.cdiv(pl.cdiv(b8, 2), 8)
    else:
        tm = block_m
    b_pad = tm * pl.cdiv(B, tm)
    grid_m = b_pad // tm

    # ---- wrapper-side padding / casts (one-time, outside the kernel).
    v_in = v
    if (b_pad, nv_p) != (B, n_visible):
        v_in = jnp.pad(v, ((0, b_pad - B), (0, nv_p - n_visible)))
    W_p = W
    if (nv_p, nh_p) != (n_visible, n_hidden):
        W_p = jnp.pad(W, ((0, nv_p - n_visible), (0, nh_p - n_hidden)))
    w_bf = W_p.astype(jnp.bfloat16)
    wt_bf = w_bf.T                                # one-time transpose of W
    bh2 = jnp.pad(b_h, (0, nh_p - n_hidden)).reshape(1, nh_p).astype(jnp.float32)
    bv2 = jnp.pad(b_v, (0, nv_p - n_visible)).reshape(1, nv_p).astype(jnp.float32)

    # ---- VMEM budget: resident bf16 W + W.T + biases, double-buffered v/out
    # tiles, f32 h intermediate.  Raise v5e's 16 MiB scoped default; cap at
    # 48 MiB so it is safe inside v7x's 64 MiB physical VMEM.  (On v5e/v6e
    # with 128 MiB VMEM the cap can be raised when sweeping larger block_m.)
    resident_bytes = 2 * nv_p * nh_p * 2 + (nv_p + nh_p) * 4
    stream_bytes = 2 * 2 * tm * nv_p * 4          # v + out tiles, x2 buffers
    h_bytes = tm * nh_p * 4
    needed = resident_bytes + stream_bytes + h_bytes
    vmem_limit = int(min(max(2 * needed, 32 << 20), 48 << 20))

    itemsize = jnp.dtype(v.dtype).itemsize
    cost = pl.CostEstimate(
        flops=2 * 2 * b_pad * nv_p * nh_p,
        transcendentals=b_pad * (nh_p + nv_p),    # one tanh per sigmoid
        bytes_accessed=(2 * b_pad * nv_p * itemsize   # v in, v' out (f32)
                        + 2 * nv_p * nh_p * 2         # W + W.T (bf16)
                        + (nv_p + nh_p) * 4),         # biases
    )

    def _run(single_buffer_resident: bool):
        res_kwargs = (
            {"pipeline_mode": pl.Buffered(1)} if single_buffer_resident else {}
        )
        grid_spec = pltpu.PrefetchScalarGridSpec(
            num_scalar_prefetch=0,
            grid=(grid_m,),
            in_specs=[
                # v: streamed per batch tile (auto double-buffered).
                pl.BlockSpec((tm, nv_p), lambda i: (i, 0)),
                # W, W.T, biases: same block every step -> resident in VMEM.
                pl.BlockSpec((nv_p, nh_p), lambda i: (0, 0), **res_kwargs),
                pl.BlockSpec((nh_p, nv_p), lambda i: (0, 0), **res_kwargs),
                pl.BlockSpec((1, nh_p), lambda i: (0, 0), **res_kwargs),
                pl.BlockSpec((1, nv_p), lambda i: (0, 0), **res_kwargs),
            ],
            out_specs=pl.BlockSpec((tm, nv_p), lambda i: (i, 0)),
        )
        return pl.pallas_call(
            rbm_kernel,
            out_shape=jax.ShapeDtypeStruct((b_pad, nv_p), v.dtype),
            grid_spec=grid_spec,
            compiler_params=pltpu.CompilerParams(
                dimension_semantics=("parallel",),   # batch tiles independent
                vmem_limit_bytes=vmem_limit,
            ),
            cost_estimate=cost,
        )(v_in, w_bf, wt_bf, bh2, bv2)

    try:
        out = _run(True)
    except Exception:
        # Fallback for jax versions where pipeline_mode / pl.Buffered is not
        # supported on top-level pallas_call BlockSpecs: default buffering.
        out = _run(False)

    # TODO(synk): for production-scale W that exceeds the resident-VMEM budget
    # (~24 MiB on v7x), add a K-reduction grid axis over n_visible for the
    # first matmul (f32 VMEM accumulator + pl.when init/finalize, axis marked
    # "arbitrary" and placed last) and tile the second matmul's n_visible
    # output dimension instead of full-W residency.

    if (b_pad, nv_p) != (B, n_visible):
        out = out[:B, :n_visible]
    return out


def rbm_forward_ref(v, W, b_h, b_v):
    h = jax.nn.sigmoid(v @ W + b_h)
    return jax.nn.sigmoid(h @ W.T + b_v)


if __name__ == "__main__":
    # Small shapes consistent with the module.
    B = 8
    n_visible = 256
    n_hidden = 128

    key = jax.random.PRNGKey(0)
    kv, kw = jax.random.split(key)

    # Deterministic parameter init mirroring torch.randn(...)*0.01 and zeros.
    W = jax.random.normal(kw, (n_visible, n_hidden), dtype=jnp.float32) * 0.01
    b_h = jnp.zeros((n_hidden,), dtype=jnp.float32)
    b_v = jnp.zeros((n_visible,), dtype=jnp.float32)

    v = jax.random.normal(kv, (B, n_visible), dtype=jnp.float32)

    out = jax.block_until_ready(rbm_forward(v, W, b_h, b_v))

    ref = rbm_forward_ref(v, W, b_h, b_v)
    assert out.shape == (B, n_visible)
    # bf16 MXU inputs -> compare against the f32 reference with a matching
    # tolerance (observed error << 1e-3 at this scale).
    assert jnp.allclose(out, ref, atol=5e-3, rtol=5e-3), "mismatch vs JAX reference"

    print("KERNEL_OK")
</pallas_src>

<mosaic_0001>
module attributes {stable_mosaic.version = 11 : i64} {
  func.func @rbm_kernel(%arg0: i32, %arg1: memref<8x256xf32, #tpu.memory_space<vmem>>, %arg2: memref<256x128xbf16, #tpu.memory_space<vmem>>, %arg3: memref<128x256xbf16, #tpu.memory_space<vmem>>, %arg4: memref<1x128xf32, #tpu.memory_space<vmem>>, %arg5: memref<1x256xf32, #tpu.memory_space<vmem>>, %arg6: memref<8x256xf32, #tpu.memory_space<vmem>>) attributes {dimension_semantics = [#tpu.dimension_semantics<parallel>], iteration_bounds = array<i64: 1>, scalar_prefetch = 0 : i64, scratch_operands = 0 : i64, tpu.core_type = #tpu.core_type<tc>, window_params = [{transform_indices = @transform_0, window_bounds = array<i64: 8, 256>}, {pipeline_mode = #tpu.pipeline_mode<synchronous>, transform_indices = @transform_1, window_bounds = array<i64: 256, 128>}, {pipeline_mode = #tpu.pipeline_mode<synchronous>, transform_indices = @transform_2, window_bounds = array<i64: 128, 256>}, {pipeline_mode = #tpu.pipeline_mode<synchronous>, transform_indices = @transform_3, window_bounds = array<i64: 1, 128>}, {pipeline_mode = #tpu.pipeline_mode<synchronous>, transform_indices = @transform_4, window_bounds = array<i64: 1, 256>}, {transform_indices = @transform_5, window_bounds = array<i64: 8, 256>}]} {
    %c0 = arith.constant 0 : index
    %c0_0 = arith.constant 0 : index
    %0 = vector.load %arg1[%c0, %c0_0] : memref<8x256xf32, #tpu.memory_space<vmem>>, vector<8x256xf32>
    %1 = arith.truncf %0 : vector<8x256xf32> to vector<8x256xbf16>
    %c0_1 = arith.constant 0 : index
    %c0_2 = arith.constant 0 : index
    %2 = vector.load %arg2[%c0_1, %c0_2] : memref<256x128xbf16, #tpu.memory_space<vmem>>, vector<256x128xbf16>
    %cst = arith.constant dense<0.000000e+00> : vector<8x128xf32>
    %3 = tpu.matmul %1, %2, %cst {dimension_numbers = #tpu.dot_dimension_numbers<[1], [0], [0], [1], [0, 0, 1, 1], [], []>} : vector<8x256xbf16>, vector<256x128xbf16>, vector<8x128xf32> -> vector<8x128xf32>
    %c0_3 = arith.constant 0 : index
    %c0_4 = arith.constant 0 : index
    %4 = vector.load %arg4[%c0_3, %c0_4] : memref<1x128xf32, #tpu.memory_space<vmem>>, vector<1x128xf32>
    %5 = vector.broadcast %4 : vector<1x128xf32> to vector<8x128xf32>
    %6 = arith.addf %3, %5 : vector<8x128xf32>
    %cst_5 = arith.constant 5.000000e-01 : f32
    %7 = vector.broadcast %cst_5 : f32 to vector<8x128xf32>
    %8 = arith.mulf %7, %6 : vector<8x128xf32>
    %9 = math.tanh %8 : vector<8x128xf32>
    %cst_6 = arith.constant 5.000000e-01 : f32
    %10 = vector.broadcast %cst_6 : f32 to vector<8x128xf32>
    %11 = arith.mulf %10, %9 : vector<8x128xf32>
    %cst_7 = arith.constant 5.000000e-01 : f32
    %12 = vector.broadcast %cst_7 : f32 to vector<8x128xf32>
    %13 = arith.addf %11, %12 : vector<8x128xf32>
    %14 = arith.truncf %13 : vector<8x128xf32> to vector<8x128xbf16>
    %c0_8 = arith.constant 0 : index
    %c0_9 = arith.constant 0 : index
    %15 = vector.load %arg3[%c0_8, %c0_9] : memref<128x256xbf16, #tpu.memory_space<vmem>>, vector<128x256xbf16>
    %cst_10 = arith.constant dense<0.000000e+00> : vector<8x256xf32>
    %16 = tpu.matmul %14, %15, %cst_10 {dimension_numbers = #tpu.dot_dimension_numbers<[1], [0], [0], [1], [0, 0, 1, 1], [], []>} : vector<8x128xbf16>, vector<128x256xbf16>, vector<8x256xf32> -> vector<8x256xf32>
    %c0_11 = arith.constant 0 : index
    %c0_12 = arith.constant 0 : index
    %17 = vector.load %arg5[%c0_11, %c0_12] : memref<1x256xf32, #tpu.memory_space<vmem>>, vector<1x256xf32>
    %18 = vector.broadcast %17 : vector<1x256xf32> to vector<8x256xf32>
    %19 = arith.addf %16, %18 : vector<8x256xf32>
    %cst_13 = arith.constant 5.000000e-01 : f32
    %20 = vector.broadcast %cst_13 : f32 to vector<8x256xf32>
    %21 = arith.mulf %20, %19 : vector<8x256xf32>
    %22 = math.tanh %21 : vector<8x256xf32>
    %cst_14 = arith.constant 5.000000e-01 : f32
    %23 = vector.broadcast %cst_14 : f32 to vector<8x256xf32>
    %24 = arith.mulf %23, %22 : vector<8x256xf32>
    %cst_15 = arith.constant 5.000000e-01 : f32
    %25 = vector.broadcast %cst_15 : f32 to vector<8x256xf32>
    %26 = arith.addf %24, %25 : vector<8x256xf32>
    %c0_16 = arith.constant 0 : index
    %c0_17 = arith.constant 0 : index
    %27 = vector.load %arg6[%c0_16, %c0_17] : memref<8x256xf32, #tpu.memory_space<vmem>>, vector<8x256xf32>
    tpu.vector_store %arg6[%c0_16, %c0_17], %26 {strides = array<i32>} : memref<8x256xf32, #tpu.memory_space<vmem>>, vector<8x256xf32>,
    return
  }
  func.func @transform_0(%arg0: i32) -> (i32, i32) {
    %c0_i32 = arith.constant 0 : i32
    %c0_i32_0 = arith.constant 0 : i32
    return %arg0, %c0_i32 : i32, i32
  }
  func.func @transform_1(%arg0: i32) -> (i32, i32) {
    %c0_i32 = arith.constant 0 : i32
    %c0_i32_0 = arith.constant 0 : i32
    %c0_i32_1 = arith.constant 0 : i32
    return %c0_i32, %c0_i32_0 : i32, i32
  }
  func.func @transform_2(%arg0: i32) -> (i32, i32) {
    %c0_i32 = arith.constant 0 : i32
    %c0_i32_0 = arith.constant 0 : i32
    %c0_i32_1 = arith.constant 0 : i32
    return %c0_i32, %c0_i32_0 : i32, i32
  }
  func.func @transform_3(%arg0: i32) -> (i32, i32) {
    %c0_i32 = arith.constant 0 : i32
    %c0_i32_0 = arith.constant 0 : i32
    %c0_i32_1 = arith.constant 0 : i32
    return %c0_i32, %c0_i32_0 : i32, i32
  }
  func.func @transform_4(%arg0: i32) -> (i32, i32) {
    %c0_i32 = arith.constant 0 : i32
    %c0_i32_0 = arith.constant 0 : i32
    %c0_i32_1 = arith.constant 0 : i32
    return %c0_i32, %c0_i32_0 : i32, i32
  }
  func.func @transform_5(%arg0: i32) -> (i32, i32) {
    %c0_i32 = arith.constant 0 : i32
    %c0_i32_0 = arith.constant 0 : i32
    return %arg0, %c0_i32 : i32, i32
  }
}

module attributes {stable_mosaic.version = 11 : i64} {
  func.func @rbm_kernel(%arg0: i32, %arg1: memref<8x256xf32, #tpu.memory_space<vmem>>, %arg2: memref<256x128xbf16, #tpu.memory_space<vmem>>, %arg3: memref<128x256xbf16, #tpu.memory_space<vmem>>, %arg4: memref<1x128xf32, #tpu.memory_space<vmem>>, %arg5: memref<1x256xf32, #tpu.memory_space<vmem>>, %arg6: memref<8x256xf32, #tpu.memory_space<vmem>>) attributes {dimension_semantics = [#tpu.dimension_semantics<parallel>], iteration_bounds = array<i64: 1>, scalar_prefetch = 0 : i64, scratch_operands = 0 : i64, tpu.core_type = #tpu.core_type<tc>, window_params = [{transform_indices = @transform_0, window_bounds = array<i64: 8, 256>}, {pipeline_mode = #tpu.pipeline_mode<synchronous>, transform_indices = @transform_1, window_bounds = array<i64: 256, 128>}, {pipeline_mode = #tpu.pipeline_mode<synchronous>, transform_indices = @transform_2, window_bounds = array<i64: 128, 256>}, {pipeline_mode = #tpu.pipeline_mode<synchronous>, transform_indices = @transform_3, window_bounds = array<i64: 1, 128>}, {pipeline_mode = #tpu.pipeline_mode<synchronous>, transform_indices = @transform_4, window_bounds = array<i64: 1, 256>}, {transform_indices = @transform_5, window_bounds = array<i64: 8, 256>}]} {
    %c0 = arith.constant 0 : index
    %c0_0 = arith.constant 0 : index
    %0 = vector.load %arg1[%c0, %c0_0] : memref<8x256xf32, #tpu.memory_space<vmem>>, vector<8x256xf32>
    %1 = arith.truncf %0 : vector<8x256xf32> to vector<8x256xbf16>
    %c0_1 = arith.constant 0 : index
    %c0_2 = arith.constant 0 : index
    %2 = vector.load %arg2[%c0_1, %c0_2] : memref<256x128xbf16, #tpu.memory_space<vmem>>, vector<256x128xbf16>
    %cst = arith.constant dense<0.000000e+00> : vector<8x128xf32>
    %3 = tpu.matmul %1, %2, %cst {dimension_numbers = #tpu.dot_dimension_numbers<[1], [0], [0], [1], [0, 0, 1, 1], [], []>} : vector<8x256xbf16>, vector<256x128xbf16>, vector<8x128xf32> -> vector<8x128xf32>
    %c0_3 = arith.constant 0 : index
    %c0_4 = arith.constant 0 : index
    %4 = vector.load %arg4[%c0_3, %c0_4] : memref<1x128xf32, #tpu.memory_space<vmem>>, vector<1x128xf32>
    %5 = vector.broadcast %4 : vector<1x128xf32> to vector<8x128xf32>
    %6 = arith.addf %3, %5 : vector<8x128xf32>
    %cst_5 = arith.constant 5.000000e-01 : f32
    %7 = vector.broadcast %cst_5 : f32 to vector<8x128xf32>
    %8 = arith.mulf %7, %6 : vector<8x128xf32>
    %9 = math.tanh %8 : vector<8x128xf32>
    %cst_6 = arith.constant 5.000000e-01 : f32
    %10 = vector.broadcast %cst_6 : f32 to vector<8x128xf32>
    %11 = arith.mulf %10, %9 : vector<8x128xf32>
    %cst_7 = arith.constant 5.000000e-01 : f32
    %12 = vector.broadcast %cst_7 : f32 to vector<8x128xf32>
    %13 = arith.addf %11, %12 : vector<8x128xf32>
    %14 = arith.truncf %13 : vector<8x128xf32> to vector<8x128xbf16>
    %c0_8 = arith.constant 0 : index
    %c0_9 = arith.constant 0 : index
    %15 = vector.load %arg3[%c0_8, %c0_9] : memref<128x256xbf16, #tpu.memory_space<vmem>>, vector<128x256xbf16>
    %cst_10 = arith.constant dense<0.000000e+00> : vector<8x256xf32>
    %16 = tpu.matmul %14, %15, %cst_10 {dimension_numbers = #tpu.dot_dimension_numbers<[1], [0], [0], [1], [0, 0, 1, 1], [], []>} : vector<8x128xbf16>, vector<128x256xbf16>, vector<8x256xf32> -> vector<8x256xf32>
    %c0_11 = arith.constant 0 : index
    %c0_12 = arith.constant 0 : index
    %17 = vector.load %arg5[%c0_11, %c0_12] : memref<1x256xf32, #tpu.memory_space<vmem>>, vector<1x256xf32>
    %18 = vector.broadcast %17 : vector<1x256xf32> to vector<8x256xf32>
    %19 = arith.addf %16, %18 : vector<8x256xf32>
    %cst_13 = arith.constant 5.000000e-01 : f32
    %20 = vector.broadcast %cst_13 : f32 to vector<8x256xf32>
    %21 = arith.mulf %20, %19 : vector<8x256xf32>
    %22 = math.tanh %21 : vector<8x256xf32>
    %cst_14 = arith.constant 5.000000e-01 : f32
    %23 = vector.broadcast %cst_14 : f32 to vector<8x256xf32>
    %24 = arith.mulf %23, %22 : vector<8x256xf32>
    %cst_15 = arith.constant 5.000000e-01 : f32
    %25 = vector.broadcast %cst_15 : f32 to vector<8x256xf32>
    %26 = arith.addf %24, %25 : vector<8x256xf32>
    %c0_16 = arith.constant 0 : index
    %c0_17 = arith.constant 0 : index
    %27 = vector.load %arg6[%c0_16, %c0_17] : memref<8x256xf32, #tpu.memory_space<vmem>>, vector<8x256xf32>
    tpu.vector_store %arg6[%c0_16, %c0_17], %26 {strides = array<i32>} : memref<8x256xf32, #tpu.memory_space<vmem>>, vector<8x256xf32>,
    return
  }
  func.func @transform_0(%arg0: i32) -> (i32, i32) {
    %c0_i32 = arith.constant 0 : i32
    %c0_i32_0 = arith.constant 0 : i32
    return %arg0, %c0_i32 : i32, i32
  }
  func.func @transform_1(%arg0: i32) -> (i32, i32) {
    %c0_i32 = arith.constant 0 : i32
    %c0_i32_0 = arith.constant 0 : i32
    %c0_i32_1 = arith.constant 0 : i32
    return %c0_i32, %c0_i32_0 : i32, i32
  }
  func.func @transform_2(%arg0: i32) -> (i32, i32) {
    %c0_i32 = arith.constant 0 : i32
    %c0_i32_0 = arith.constant 0 : i32
    %c0_i32_1 = arith.constant 0 : i32
    return %c0_i32, %c0_i32_0 : i32, i32
  }
  func.func @transform_3(%arg0: i32) -> (i32, i32) {
    %c0_i32 = arith.constant 0 : i32
    %c0_i32_0 = arith.constant 0 : i32
    %c0_i32_1 = arith.constant 0 : i32
    return %c0_i32, %c0_i32_0 : i32, i32
  }
  func.func @transform_4(%arg0: i32) -> (i32, i32) {
    %c0_i32 = arith.constant 0 : i32
    %c0_i32_0 = arith.constant 0 : i32
    %c0_i32_1 = arith.constant 0 : i32
    return %c0_i32, %c0_i32_0 : i32, i32
  }
  func.func @transform_5(%arg0: i32) -> (i32, i32) {
    %c0_i32 = arith.constant 0 : i32
    %c0_i32_0 = arith.constant 0 : i32
    return %arg0, %c0_i32 : i32, i32
  }
}

</mosaic_0001>

<llo_original>
// kernel: tpu_custom_call.1
$region0: #{tpu_custom_call.1}
  #allocation0 [shape = 'u32[]', space=smem, size = 0x4, offset = 0x4, fixed_abs, tag = 'smem constant byte address 0x4 - core index']
  #allocation1 [shape = 'u32[72,128]{1,0:T(1,128)}', space=vmem, size = 0x9000, scoped, tag = 'internal scratch']
  %s0 = inlined_call_operand.hbm [shape: f32[8,256], index: 0, kind: input, shape index: {}]
  %s1 = inlined_call_operand.hbm [shape: bf16[256,128], index: 1, kind: input, shape index: {}]
  %s2 = inlined_call_operand.hbm [shape: bf16[128,256], index: 2, kind: input, shape index: {}]
  %s3 = inlined_call_operand.vmem [shape: f32[1,128], index: 3, kind: input, shape index: {}]
  %s4 = inlined_call_operand.vmem [shape: f32[1,256], index: 4, kind: input, shape index: {}]
  %s5 = inlined_call_operand.hbm [shape: f32[8,256], index: 5, kind: output, shape index: {}]
  %s6 = sld [smem:[#allocation0]]
  $region42: #{tpu_custom_call.1} parent=0
    _
  %s8 = ssub.s32 1, %s6
  %s9 = scalar_select 0, %s8, %s6
  $region1: #{tpu_custom_call.1} parent=0
    #allocation2 [shape = 'u8[8192]{0}', space=vmem, size = 0x2000, scoped, tag = 'input window, operand 0, single buffered']
    #allocation3 [shape = 's32[1]{0}', space=sflag, size = 0x4, scoped, tag = 'scoped memory for tpu_custom_call.1']
    #allocation4 [shape = 's32[1]{0}', space=sflag, size = 0x4, scoped, tag = 'scoped memory for tpu_custom_call.1']
    #allocation5 [shape = 'u8[65536]{0}', space=vmem, size = 0x10000, scoped, tag = 'input window, operand 1, single buffered']
    #allocation6 [shape = 's32[1]{0}', space=sflag, size = 0x4, scoped, tag = 'scoped memory for tpu_custom_call.1']
    #allocation7 [shape = 'u8[65536]{0}', space=vmem, size = 0x10000, scoped, tag = 'input window, operand 2, single buffered']
    #allocation8 [shape = 'u8[8192]{0}', space=vmem, size = 0x2000, scoped, tag = 'output window, operand 0, single buffered']
    %10 = vsyncpa [#allocation3], 0
    %11 = vsyncpa [#allocation6], 0
    %12 = vsyncpa [#allocation4], 0
    // Predicated region
    $region2: #{tpu_custom_call.1} parent=1 // pred_check
      _
    $region3: #{tpu_custom_call.1} parent=1 // pred_check_branch
      %14 = sbr.rel (0) target = $region5
    $region4: #{tpu_custom_call.1} parent=1 // pred_region
      %16 = vsyncadd [#allocation3], 0
      %s18 = sshll.u32 %s0, 4
      %s19 = int_to_ptr.hbm [resolvable:$true] %s18
      %s20 = sshll.u32 [#allocation2], 4
      %s21 = int_to_ptr.vmem [resolvable:$true] %s20
      %23 = dma.hbm_to_vmem [thread:$0]  %s19, 256, %s21, [#allocation3]
    $region5: #{tpu_custom_call.1} parent=1 // pred_fallthru
      _
    // Predicated region
    $region6: #{tpu_custom_call.1} parent=1 // pred_check
      _
    $region7: #{tpu_custom_call.1} parent=1 // pred_check_branch
      %25 = sbr.rel (0) target = $region9
    $region8: #{tpu_custom_call.1} parent=1 // pred_region
      %27 = vsyncadd [#allocation6], 0
      %s28 = sshll.u32 %s1, 4
      %s29 = int_to_ptr.hbm [resolvable:$true] %s28
      %s30 = sshll.u32 [#allocation5], 4
      %s31 = int_to_ptr.vmem [resolvable:$true] %s30
      %36 = dma.hbm_to_vmem [thread:$0]  %s29, 2048, %s31, [#allocation6], 64, 64, 4
    $region9: #{tpu_custom_call.1} parent=1 // pred_fallthru
      _
    // Predicated region
    $region10: #{tpu_custom_call.1} parent=1 // pred_check
      _
    $region11: #{tpu_custom_call.1} parent=1 // pred_check_branch
      %38 = sbr.rel (0) target = $region13
    $region12: #{tpu_custom_call.1} parent=1 // pred_region
      %40 = vsyncadd [#allocation6], 0
      %s41 = sshll.u32 %s2, 4
      %s42 = int_to_ptr.hbm [resolvable:$true] %s41
      %s43 = sshll.u32 [#allocation7], 4
      %s44 = int_to_ptr.vmem [resolvable:$true] %s43
      %49 = dma.hbm_to_vmem [thread:$0]  %s42, 2048, %s44, [#allocation6], 128, 128, 8
    $region13: #{tpu_custom_call.1} parent=1 // pred_fallthru
      _
    // Predicated region
    $region14: #{tpu_custom_call.1} parent=1 // pred_check
      _
    $region15: #{tpu_custom_call.1} parent=1 // pred_check_branch
      %51 = sbr.rel (0) target = $region17
    $region16: #{tpu_custom_call.1} parent=1 // pred_region
      _
    $region17: #{tpu_custom_call.1} parent=1 // pred_fallthru
      _
    // Predicated region
    $region18: #{tpu_custom_call.1} parent=1 // pred_check
      _
    $region19: #{tpu_custom_call.1} parent=1 // pred_check_branch
      %53 = sbr.rel (0) target = $region21
    $region20: #{tpu_custom_call.1} parent=1 // pred_region
      _
    $region21: #{tpu_custom_call.1} parent=1 // pred_fallthru
      _
    // Predicated region
    $region22: #{tpu_custom_call.1} parent=1 // pred_check
      _
    $region23: #{tpu_custom_call.1} parent=1 // pred_check_branch
      %55 = sbr.rel (0) target = $region25
    $region24: #{tpu_custom_call.1} parent=1 // pred_region
      %57 = dma.done [#allocation3], 256
    $region25: #{tpu_custom_call.1} parent=1 // pred_fallthru
      _
    // Predicated region
    $region26: #{tpu_custom_call.1} parent=1 // pred_check
      _
    $region27: #{tpu_custom_call.1} parent=1 // pred_check_branch
      %59 = sbr.rel (0) target = $region29
    $region28: #{tpu_custom_call.1} parent=1 // pred_region
      %61 = dma.done [#allocation6], 2048
    $region29: #{tpu_custom_call.1} parent=1 // pred_fallthru
      _
    // Predicated region
    $region30: #{tpu_custom_call.1} parent=1 // pred_check
      _
    $region31: #{tpu_custom_call.1} parent=1 // pred_check_branch
      %63 = sbr.rel (0) target = $region33
    $region32: #{tpu_custom_call.1} parent=1 // pred_region
      %65 = dma.done [#allocation6], 2048
    $region33: #{tpu_custom_call.1} parent=1 // pred_fallthru
      _
    %v66 = vld [vmem:[#allocation2] sm:$0xff]
    %v67 = vld [vmem:[#allocation2 + $0x8] sm:$0xff]
    %v68 = vpack.c.bf16 %v66, %v66
    %v69 = vpack.c.bf16 %v67, %v67
    %v70 = vld [vmem:[#allocation5] sm:$0xf]
    %v71 = vld [vmem:[#allocation5 + $0x4] sm:$0xf]
    %v72 = vld [vmem:[#allocation5 + $0x8] sm:$0xf]
    %v73 = vld [vmem:[#allocation5 + $0xc] sm:$0xf]
    %v74 = vld [vmem:[#allocation5 + $0x10] sm:$0xf]
    %v75 = vld [vmem:[#allocation5 + $0x14] sm:$0xf]
    %v76 = vld [vmem:[#allocation5 + $0x18] sm:$0xf]
    %v77 = vld [vmem:[#allocation5 + $0x1c] sm:$0xf]
    %v78 = vld [vmem:[#allocation5 + $0x20] sm:$0xf]
    %v79 = vld [vmem:[#allocation5 + $0x24] sm:$0xf]
    %v80 = vld [vmem:[#allocation5 + $0x28] sm:$0xf]
    %v81 = vld [vmem:[#allocation5 + $0x2c] sm:$0xf]
    %v82 = vld [vmem:[#allocation5 + $0x30] sm:$0xf]
    %v83 = vld [vmem:[#allocation5 + $0x34] sm:$0xf]
    %v84 = vld [vmem:[#allocation5 + $0x38] sm:$0xf]
    %v85 = vld [vmem:[#allocation5 + $0x3c] sm:$0xf]
    %v86 = vld [vmem:[#allocation5 + $0x40] sm:$0xf]
    %v87 = vld [vmem:[#allocation5 + $0x44] sm:$0xf]
    %v88 = vld [vmem:[#allocation5 + $0x48] sm:$0xf]
    %v89 = vld [vmem:[#allocation5 + $0x4c] sm:$0xf]
    %v90 = vld [vmem:[#allocation5 + $0x50] sm:$0xf]
    %v91 = vld [vmem:[#allocation5 + $0x54] sm:$0xf]
    %v92 = vld [vmem:[#allocation5 + $0x58] sm:$0xf]
    %v93 = vld [vmem:[#allocation5 + $0x5c] sm:$0xf]
    %v94 = vld [vmem:[#allocation5 + $0x60] sm:$0xf]
    %v95 = vld [vmem:[#allocation5 + $0x64] sm:$0xf]
    %v96 = vld [vmem:[#allocation5 + $0x68] sm:$0xf]
    %v97 = vld [vmem:[#allocation5 + $0x6c] sm:$0xf]
    %v98 = vld [vmem:[#allocation5 + $0x70] sm:$0xf]
    %v99 = vld [vmem:[#allocation5 + $0x74] sm:$0xf]
    %v100 = vld [vmem:[#allocation5 + $0x78] sm:$0xf]
    %v101 = vld [vmem:[#allocation5 + $0x7c] sm:$0xf]
    %v102 = vld [vmem:[%s3] sm:$0x1]
    %v104 = vperm.slane %v102, 0
    %v138 = vunpack.c.l.b16 %v70
    %v139 = vunpack.c.l.b16 %v71
    %v140 = vunpack.c.l.b16 %v72
    %v141 = vunpack.c.l.b16 %v73
    %v142 = vunpack.c.l.b16 %v74
    %v143 = vunpack.c.l.b16 %v75
    %v144 = vunpack.c.l.b16 %v76
    %v145 = vunpack.c.l.b16 %v77
    %v146 = vunpack.c.l.b16 %v78
    %v147 = vunpack.c.l.b16 %v79
    %v148 = vunpack.c.l.b16 %v80
    %v149 = vunpack.c.l.b16 %v81
    %v150 = vunpack.c.l.b16 %v82
    %v151 = vunpack.c.l.b16 %v83
    %v152 = vunpack.c.l.b16 %v84
    %v153 = vunpack.c.l.b16 %v85
    %v154 = vunpack.c.l.b16 %v86
    %v155 = vunpack.c.l.b16 %v87
    %v156 = vunpack.c.l.b16 %v88
    %v157 = vunpack.c.l.b16 %v89
    %v158 = vunpack.c.l.b16 %v90
    %v159 = vunpack.c.l.b16 %v91
    %v160 = vunpack.c.l.b16 %v92
    %v161 = vunpack.c.l.b16 %v93
    %v162 = vunpack.c.l.b16 %v94
    %v163 = vunpack.c.l.b16 %v95
    %v164 = vunpack.c.l.b16 %v96
    %v165 = vunpack.c.l.b16 %v97
    %v166 = vunpack.c.l.b16 %v98
    %v167 = vunpack.c.l.b16 %v99
    %v168 = vunpack.c.l.b16 %v100
    %v169 = vunpack.c.l.b16 %v101
    %v170 = vpack.c.b16 %v139, %v138
    %v171 = vpack.c.b16 %v141, %v140
    %v172 = vpack.c.b16 %v143, %v142
    %v173 = vpack.c.b16 %v145, %v144
    %v174 = vpack.c.b16 %v147, %v146
    %v175 = vpack.c.b16 %v149, %v148
    %v176 = vpack.c.b16 %v151, %v150
    %v177 = vpack.c.b16 %v153, %v152
    %v178 = vpack.c.b16 %v155, %v154
    %v179 = vpack.c.b16 %v157, %v156
    %v180 = vpack.c.b16 %v159, %v158
    %v181 = vpack.c.b16 %v161, %v160
    %v182 = vpack.c.b16 %v163, %v162
    %v183 = vpack.c.b16 %v165, %v164
    %v184 = vpack.c.b16 %v167, %v166
    %v185 = vpack.c.b16 %v169, %v168
    %202 = vmatpush.bf16.msra.mxu0 %v177
    %203 = vmatpush.bf16.msra.mxu0 %v176
    %204 = vmatpush.bf16.msra.mxu0 %v175
    %205 = vmatpush.bf16.msra.mxu0 %v174
    %206 = vmatpush.bf16.msra.mxu0 %v173
    %207 = vmatpush.bf16.msra.mxu0 %v172
    %208 = vmatpush.bf16.msra.mxu0 %v171
    %209 = vmatpush.bf16.msra.mxu0 %v170
    %210 = vmatmul.bf16.gmra.mxu0 %v68
    %v211 = vpop.f32.mrf.mxu0
    %v212 = vadd.f32 %v104, %v211
    %v213 = vpop.f32.mrf.mxu0
    %214 = vdwg.mxu0
    %215 = vmatpush.bf16.msra.mxu0 %v185
    %216 = vmatpush.bf16.msra.mxu0 %v184
    %217 = vmatpush.bf16.msra.mxu0 %v183
    %218 = vmatpush.bf16.msra.mxu0 %v182
    %219 = vmatpush.bf16.msra.mxu0 %v181
    %220 = vmatpush.bf16.msra.mxu0 %v180
    %221 = vmatpush.bf16.msra.mxu0 %v179
    %222 = vmatpush.bf16.msra.mxu0 %v178
    %223 = vmatmul.bf16.gmra.mxu0 %v69
    %v224 = vpop.f32.mrf.mxu0
    %v225 = vadd.f32 %v212, %v224
    %v226 = vpop.f32.mrf.mxu0
    %227 = vdwg.mxu0
    %v228 = vmul.f32 %v225, 0.5
    %v229 = vtanh.pop %v228
    %v230 = vmul.f32 %v229, 0.5
    %v231 = vadd.f32 %v230, 0.5
    %v232 = vpack.c.bf16 %v231, %v231
    %v233 = vld [vmem:[#allocation7] sm:$0xff]
    %v234 = vld [vmem:[#allocation7 + $0x8] sm:$0xff]
    %v235 = vld [vmem:[#allocation7 + $0x10] sm:$0xff]
    %v236 = vld [vmem:[#allocation7 + $0x18] sm:$0xff]
    %v237 = vld [vmem:[#allocation7 + $0x20] sm:$0xff]
    %v238 = vld [vmem:[#allocation7 + $0x28] sm:$0xff]
    %v239 = vld [vmem:[#allocation7 + $0x30] sm:$0xff]
    %v240 = vld [vmem:[#allocation7 + $0x38] sm:$0xff]
    %v241 = vld [vmem:[#allocation7 + $0x40] sm:$0xff]
    %v242 = vld [vmem:[#allocation7 + $0x48] sm:$0xff]
    %v243 = vld [vmem:[#allocation7 + $0x50] sm:$0xff]
    %v244 = vld [vmem:[#allocation7 + $0x58] sm:$0xff]
    %v245 = vld [vmem:[#allocation7 + $0x60] sm:$0xff]
    %v246 = vld [vmem:[#allocation7 + $0x68] sm:$0xff]
    %v247 = vld [vmem:[#allocation7 + $0x70] sm:$0xff]
    %v248 = vld [vmem:[#allocation7 + $0x78] sm:$0xff]
    %v249 = vld [vmem:[%s4] sm:$0x3]
    %v251 = vperm.slane %v249, 0
    %v252 = vperm.slane %v249, 1
    %v271 = vunpack.c.l.b16 %v233
    %v272 = vunpack.c.h.b16 %v233
    %v273 = vunpack.c.l.b16 %v234
    %v274 = vunpack.c.h.b16 %v234
    %v275 = vunpack.c.l.b16 %v235
    %v276 = vunpack.c.h.b16 %v235
    %v277 = vunpack.c.l.b16 %v236
    %v278 = vunpack.c.h.b16 %v236
    %v279 = vunpack.c.l.b16 %v237
    %v280 = vunpack.c.h.b16 %v237
    %v281 = vunpack.c.l.b16 %v238
    %v282 = vunpack.c.h.b16 %v238
    %v283 = vunpack.c.l.b16 %v239
    %v284 = vunpack.c.h.b16 %v239
    %v285 = vunpack.c.l.b16 %v240
    %v286 = vunpack.c.h.b16 %v240
    %v287 = vunpack.c.l.b16 %v241
    %v288 = vunpack.c.h.b16 %v241
    %v289 = vunpack.c.l.b16 %v242
    %v290 = vunpack.c.h.b16 %v242
    %v291 = vunpack.c.l.b16 %v243
    %v292 = vunpack.c.h.b16 %v243
    %v293 = vunpack.c.l.b16 %v244
    %v294 = vunpack.c.h.b16 %v244
    %v295 = vunpack.c.l.b16 %v245
    %v296 = vunpack.c.h.b16 %v245
    %v297 = vunpack.c.l.b16 %v246
    %v298 = vunpack.c.h.b16 %v246
    %v299 = vunpack.c.l.b16 %v247
    %v300 = vunpack.c.h.b16 %v247
    %v301 = vunpack.c.l.b16 %v248
    %v302 = vunpack.c.h.b16 %v248
    %v303 = vpack.c.b16 %v273, %v271
    %v304 = vpack.c.b16 %v274, %v272
    %v305 = vpack.c.b16 %v277, %v275
    %v306 = vpack.c.b16 %v278, %v276
    %v307 = vpack.c.b16 %v281, %v279
    %v308 = vpack.c.b16 %v282, %v280
    %v309 = vpack.c.b16 %v285, %v283
    %v310 = vpack.c.b16 %v286, %v284
    %v311 = vpack.c.b16 %v289, %v287
    %v312 = vpack.c.b16 %v290, %v288
    %v313 = vpack.c.b16 %v293, %v291
    %v314 = vpack.c.b16 %v294, %v292
    %v315 = vpack.c.b16 %v297, %v295
    %v316 = vpack.c.b16 %v298, %v296
    %v317 = vpack.c.b16 %v301, %v299
    %v318 = vpack.c.b16 %v302, %v300
    %335 = vmatpush.bf16.msra.mxu0 %v317
    %336 = vmatpush.bf16.msra.mxu0 %v315
    %337 = vmatpush.bf16.msra.mxu0 %v313
    %338 = vmatpush.bf16.msra.mxu0 %v311
    %339 = vmatpush.bf16.msra.mxu0 %v309
    %340 = vmatpush.bf16.msra.mxu0 %v307
    %341 = vmatpush.bf16.msra.mxu0 %v305
    %342 = vmatpush.bf16.msra.mxu0 %v303
    %343 = vmatmul.bf16.gmra.mxu0 %v232
    %v344 = vpop.f32.mrf.mxu0
    %v345 = vadd.f32 %v251, %v344
    %v346 = vpop.f32.mrf.mxu0
    %347 = vdwg.mxu0
    %348 = vmatpush.bf16.msra.mxu0 %v318
    %349 = vmatpush.bf16.msra.mxu0 %v316
    %350 = vmatpush.bf16.msra.mxu0 %v314
    %351 = vmatpush.bf16.msra.mxu0 %v312
    %352 = vmatpush.bf16.msra.mxu0 %v310
    %353 = vmatpush.bf16.msra.mxu0 %v308
    %354 = vmatpush.bf16.msra.mxu0 %v306
    %355 = vmatpush.bf16.msra.mxu0 %v304
    %356 = vmatmul.bf16.gmra.mxu0 %v232
    %v357 = vpop.f32.mrf.mxu0
    %v358 = vadd.f32 %v252, %v357
    %v359 = vpop.f32.mrf.mxu0
    %360 = vdwg.mxu0
    %v361 = vmul.f32 %v345, 0.5
    %v362 = vmul.f32 %v358, 0.5
    %v363 = vtanh.pop %v361
    %v364 = vtanh.pop %v362
    %v365 = vmul.f32 %v363, 0.5
    %v366 = vmul.f32 %v364, 0.5
    %v367 = vadd.f32 %v365, 0.5
    %v368 = vadd.f32 %v366, 0.5
    %369 = vst [vmem:[#allocation8] sm:$0xff] %v367
    %370 = vst [vmem:[#allocation8 + $0x8] sm:$0xff] %v368
    // Predicated region
    $region34: #{tpu_custom_call.1} parent=1 // pred_check
      _
    $region35: #{tpu_custom_call.1} parent=1 // pred_check_branch
      %372 = sbr.rel (0) target = $region37
    $region36: #{tpu_custom_call.1} parent=1 // pred_region
      %374 = vsyncadd [#allocation4], 0
      %s376 = sshll.u32 [#allocation8], 4
      %s377 = int_to_ptr.vmem [resolvable:$true] %s376
      %s378 = sshll.u32 %s5, 4
      %s379 = int_to_ptr.hbm [resolvable:$true] %s378
      %381 = dma.vmem_to_hbm [thread:$0]  %s377, 256, %s379, [#allocation4]
    $region37: #{tpu_custom_call.1} parent=1 // pred_fallthru
      _
    // Predicated region
    $region38: #{tpu_custom_call.1} parent=1 // pred_check
      _
    $region39: #{tpu_custom_call.1} parent=1 // pred_check_branch
      %383 = sbr.rel (0) target = $region41
    $region40: #{tpu_custom_call.1} parent=1 // pred_region
      %385 = dma.done [#allocation4], 256
    $region41: #{tpu_custom_call.1} parent=1 // pred_fallthru
      _
    %386 = vsyncpa [#allocation3], 1
    %387 = vsyncpa [#allocation6], 1
    %388 = vsyncpa [#allocation4], 1

// kernel: tpu_custom_call.1
$region0: #{tpu_custom_call.1}
  #allocation0 [shape = 'u32[]', space=smem, size = 0x4, offset = 0x4, fixed_abs, tag = 'smem constant byte address 0x4 - core index']
  #allocation1 [shape = 'u32[72,128]{1,0:T(1,128)}', space=vmem, size = 0x9000, scoped, tag = 'internal scratch']
  %s0 = inlined_call_operand.hbm [shape: f32[8,256], index: 0, kind: input, shape index: {}]
  %s1 = inlined_call_operand.hbm [shape: bf16[256,128], index: 1, kind: input, shape index: {}]
  %s2 = inlined_call_operand.hbm [shape: bf16[128,256], index: 2, kind: input, shape index: {}]
  %s3 = inlined_call_operand.vmem [shape: f32[1,128], index: 3, kind: input, shape index: {}]
  %s4 = inlined_call_operand.vmem [shape: f32[1,256], index: 4, kind: input, shape index: {}]
  %s5 = inlined_call_operand.hbm [shape: f32[8,256], index: 5, kind: output, shape index: {}]
  %s6 = sld [smem:[#allocation0]]
  $region42: #{tpu_custom_call.1} parent=0
    _
  %s8 = ssub.s32 1, %s6
  %s9 = scalar_select 0, %s8, %s6
  $region1: #{tpu_custom_call.1} parent=0
    #allocation2 [shape = 'u8[8192]{0}', space=vmem, size = 0x2000, scoped, tag = 'input window, operand 0, single buffered']
    #allocation3 [shape = 's32[1]{0}', space=sflag, size = 0x4, scoped, tag = 'scoped memory for tpu_custom_call.1']
    #allocation4 [shape = 's32[1]{0}', space=sflag, size = 0x4, scoped, tag = 'scoped memory for tpu_custom_call.1']
    #allocation5 [shape = 'u8[65536]{0}', space=vmem, size = 0x10000, scoped, tag = 'input window, operand 1, single buffered']
    #allocation6 [shape = 's32[1]{0}', space=sflag, size = 0x4, scoped, tag = 'scoped memory for tpu_custom_call.1']
    #allocation7 [shape = 'u8[65536]{0}', space=vmem, size = 0x10000, scoped, tag = 'input window, operand 2, single buffered']
    #allocation8 [shape = 'u8[8192]{0}', space=vmem, size = 0x2000, scoped, tag = 'output window, operand 0, single buffered']
    %10 = vsyncpa [#allocation3], 0
    %11 = vsyncpa [#allocation6], 0
    %12 = vsyncpa [#allocation4], 0
    // Predicated region
    $region2: #{tpu_custom_call.1} parent=1 // pred_check
      _
    $region3: #{tpu_custom_call.1} parent=1 // pred_check_branch
      %14 = sbr.rel (0) target = $region5
    $region4: #{tpu_custom_call.1} parent=1 // pred_region
      %16 = vsyncadd [#allocation3], 0
      %s18 = sshll.u32 %s0, 4
      %s19 = int_to_ptr.hbm [resolvable:$true] %s18
      %s20 = sshll.u32 [#allocation2], 4
      %s21 = int_to_ptr.vmem [resolvable:$true] %s20
      %23 = dma.hbm_to_vmem [thread:$0]  %s19, 256, %s21, [#allocation3]
    $region5: #{tpu_custom_call.1} parent=1 // pred_fallthru
      _
    // Predicated region
    $region6: #{tpu_custom_call.1} parent=1 // pred_check
      _
    $region7: #{tpu_custom_call.1} parent=1 // pred_check_branch
      %25 = sbr.rel (0) target = $region9
    $region8: #{tpu_custom_call.1} parent=1 // pred_region
      %27 = vsyncadd [#allocation6], 0
      %s28 = sshll.u32 %s1, 4
      %s29 = int_to_ptr.hbm [resolvable:$true] %s28
      %s30 = sshll.u32 [#allocation5], 4
      %s31 = int_to_ptr.vmem [resolvable:$true] %s30
      %36 = dma.hbm_to_vmem [thread:$0]  %s29, 2048, %s31, [#allocation6], 64, 64, 4
    $region9: #{tpu_custom_call.1} parent=1 // pred_fallthru
      _
    // Predicated region
    $region10: #{tpu_custom_call.1} parent=1 // pred_check
      _
    $region11: #{tpu_custom_call.1} parent=1 // pred_check_branch
      %38 = sbr.rel (0) target = $region13
    $region12: #{tpu_custom_call.1} parent=1 // pred_region
      %40 = vsyncadd [#allocation6], 0
      %s41 = sshll.u32 %s2, 4
      %s42 = int_to_ptr.hbm [resolvable:$true] %s41
      %s43 = sshll.u32 [#allocation7], 4
      %s44 = int_to_ptr.vmem [resolvable:$true] %s43
      %49 = dma.hbm_to_vmem [thread:$0]  %s42, 2048, %s44, [#allocation6], 128, 128, 8
    $region13: #{tpu_custom_call.1} parent=1 // pred_fallthru
      _
    // Predicated region
    $region14: #{tpu_custom_call.1} parent=1 // pred_check
      _
    $region15: #{tpu_custom_call.1} parent=1 // pred_check_branch
      %51 = sbr.rel (0) target = $region17
    $region16: #{tpu_custom_call.1} parent=1 // pred_region
      _
    $region17: #{tpu_custom_call.1} parent=1 // pred_fallthru
      _
    // Predicated region
    $region18: #{tpu_custom_call.1} parent=1 // pred_check
      _
    $region19: #{tpu_custom_call.1} parent=1 // pred_check_branch
      %53 = sbr.rel (0) target = $region21
    $region20: #{tpu_custom_call.1} parent=1 // pred_region
      _
    $region21: #{tpu_custom_call.1} parent=1 // pred_fallthru
      _
    // Predicated region
    $region22: #{tpu_custom_call.1} parent=1 // pred_check
      _
    $region23: #{tpu_custom_call.1} parent=1 // pred_check_branch
      %55 = sbr.rel (0) target = $region25
    $region24: #{tpu_custom_call.1} parent=1 // pred_region
      %57 = dma.done [#allocation3], 256
    $region25: #{tpu_custom_call.1} parent=1 // pred_fallthru
      _
    // Predicated region
    $region26: #{tpu_custom_call.1} parent=1 // pred_check
      _
    $region27: #{tpu_custom_call.1} parent=1 // pred_check_branch
      %59 = sbr.rel (0) target = $region29
    $region28: #{tpu_custom_call.1} parent=1 // pred_region
      %61 = dma.done [#allocation6], 2048
    $region29: #{tpu_custom_call.1} parent=1 // pred_fallthru
      _
    // Predicated region
    $region30: #{tpu_custom_call.1} parent=1 // pred_check
      _
    $region31: #{tpu_custom_call.1} parent=1 // pred_check_branch
      %63 = sbr.rel (0) target = $region33
    $region32: #{tpu_custom_call.1} parent=1 // pred_region
      %65 = dma.done [#allocation6], 2048
    $region33: #{tpu_custom_call.1} parent=1 // pred_fallthru
      _
    %v66 = vld [vmem:[#allocation2] sm:$0xff]
    %v67 = vld [vmem:[#allocation2 + $0x8] sm:$0xff]
    %v68 = vpack.c.bf16 %v66, %v66
    %v69 = vpack.c.bf16 %v67, %v67
    %v70 = vld [vmem:[#allocation5] sm:$0xf]
    %v71 = vld [vmem:[#allocation5 + $0x4] sm:$0xf]
    %v72 = vld [vmem:[#allocation5 + $0x8] sm:$0xf]
    %v73 = vld [vmem:[#allocation5 + $0xc] sm:$0xf]
    %v74 = vld [vmem:[#allocation5 + $0x10] sm:$0xf]
    %v75 = vld [vmem:[#allocation5 + $0x14] sm:$0xf]
    %v76 = vld [vmem:[#allocation5 + $0x18] sm:$0xf]
    %v77 = vld [vmem:[#allocation5 + $0x1c] sm:$0xf]
    %v78 = vld [vmem:[#allocation5 + $0x20] sm:$0xf]
    %v79 = vld [vmem:[#allocation5 + $0x24] sm:$0xf]
    %v80 = vld [vmem:[#allocation5 + $0x28] sm:$0xf]
    %v81 = vld [vmem:[#allocation5 + $0x2c] sm:$0xf]
    %v82 = vld [vmem:[#allocation5 + $0x30] sm:$0xf]
    %v83 = vld [vmem:[#allocation5 + $0x34] sm:$0xf]
    %v84 = vld [vmem:[#allocation5 + $0x38] sm:$0xf]
    %v85 = vld [vmem:[#allocation5 + $0x3c] sm:$0xf]
    %v86 = vld [vmem:[#allocation5 + $0x40] sm:$0xf]
    %v87 = vld [vmem:[#allocation5 + $0x44] sm:$0xf]
    %v88 = vld [vmem:[#allocation5 + $0x48] sm:$0xf]
    %v89 = vld [vmem:[#allocation5 + $0x4c] sm:$0xf]
    %v90 = vld [vmem:[#allocation5 + $0x50] sm:$0xf]
    %v91 = vld [vmem:[#allocation5 + $0x54] sm:$0xf]
    %v92 = vld [vmem:[#allocation5 + $0x58] sm:$0xf]
    %v93 = vld [vmem:[#allocation5 + $0x5c] sm:$0xf]
    %v94 = vld [vmem:[#allocation5 + $0x60] sm:$0xf]
    %v95 = vld [vmem:[#allocation5 + $0x64] sm:$0xf]
    %v96 = vld [vmem:[#allocation5 + $0x68] sm:$0xf]
    %v97 = vld [vmem:[#allocation5 + $0x6c] sm:$0xf]
    %v98 = vld [vmem:[#allocation5 + $0x70] sm:$0xf]
    %v99 = vld [vmem:[#allocation5 + $0x74] sm:$0xf]
    %v100 = vld [vmem:[#allocation5 + $0x78] sm:$0xf]
    %v101 = vld [vmem:[#allocation5 + $0x7c] sm:$0xf]
    %v102 = vld [vmem:[%s3] sm:$0x1]
    %v104 = vperm.slane %v102, 0
    %v138 = vunpack.c.l.b16 %v70
    %v139 = vunpack.c.l.b16 %v71
    %v140 = vunpack.c.l.b16 %v72
    %v141 = vunpack.c.l.b16 %v73
    %v142 = vunpack.c.l.b16 %v74
    %v143 = vunpack.c.l.b16 %v75
    %v144 = vunpack.c.l.b16 %v76
    %v145 = vunpack.c.l.b16 %v77
    %v146 = vunpack.c.l.b16 %v78
    %v147 = vunpack.c.l.b16 %v79
    %v148 = vunpack.c.l.b16 %v80
    %v149 = vunpack.c.l.b16 %v81
    %v150 = vunpack.c.l.b16 %v82
    %v151 = vunpack.c.l.b16 %v83
    %v152 = vunpack.c.l.b16 %v84
    %v153 = vunpack.c.l.b16 %v85
    %v154 = vunpack.c.l.b16 %v86
    %v155 = vunpack.c.l.b16 %v87
    %v156 = vunpack.c.l.b16 %v88
    %v157 = vunpack.c.l.b16 %v89
    %v158 = vunpack.c.l.b16 %v90
    %v159 = vunpack.c.l.b16 %v91
    %v160 = vunpack.c.l.b16 %v92
    %v161 = vunpack.c.l.b16 %v93
    %v162 = vunpack.c.l.b16 %v94
    %v163 = vunpack.c.l.b16 %v95
    %v164 = vunpack.c.l.b16 %v96
    %v165 = vunpack.c.l.b16 %v97
    %v166 = vunpack.c.l.b16 %v98
    %v167 = vunpack.c.l.b16 %v99
    %v168 = vunpack.c.l.b16 %v100
    %v169 = vunpack.c.l.b16 %v101
    %v170 = vpack.c.b16 %v139, %v138
    %v171 = vpack.c.b16 %v141, %v140
    %v172 = vpack.c.b16 %v143, %v142
    %v173 = vpack.c.b16 %v145, %v144
    %v174 = vpack.c.b16 %v147, %v146
    %v175 = vpack.c.b16 %v149, %v148
    %v176 = vpack.c.b16 %v151, %v150
    %v177 = vpack.c.b16 %v153, %v152
    %v178 = vpack.c.b16 %v155, %v154
    %v179 = vpack.c.b16 %v157, %v156
    %v180 = vpack.c.b16 %v159, %v158
    %v181 = vpack.c.b16 %v161, %v160
    %v182 = vpack.c.b16 %v163, %v162
    %v183 = vpack.c.b16 %v165, %v164
    %v184 = vpack.c.b16 %v167, %v166
    %v185 = vpack.c.b16 %v169, %v168
    %202 = vmatpush.bf16.msra.mxu0 %v177
    %203 = vmatpush.bf16.msra.mxu0 %v176
    %204 = vmatpush.bf16.msra.mxu0 %v175
    %205 = vmatpush.bf16.msra.mxu0 %v174
    %206 = vmatpush.bf16.msra.mxu0 %v173
    %207 = vmatpush.bf16.msra.mxu0 %v172
    %208 = vmatpush.bf16.msra.mxu0 %v171
    %209 = vmatpush.bf16.msra.mxu0 %v170
    %210 = vmatmul.bf16.gmra.mxu0 %v68
    %v211 = vpop.f32.mrf.mxu0
    %v212 = vadd.f32 %v104, %v211
    %v213 = vpop.f32.mrf.mxu0
    %214 = vdwg.mxu0
    %215 = vmatpush.bf16.msra.mxu0 %v185
    %216 = vmatpush.bf16.msra.mxu0 %v184
    %217 = vmatpush.bf16.msra.mxu0 %v183
    %218 = vmatpush.bf16.msra.mxu0 %v182
    %219 = vmatpush.bf16.msra.mxu0 %v181
    %220 = vmatpush.bf16.msra.mxu0 %v180
    %221 = vmatpush.bf16.msra.mxu0 %v179
    %222 = vmatpush.bf16.msra.mxu0 %v178
    %223 = vmatmul.bf16.gmra.mxu0 %v69
    %v224 = vpop.f32.mrf.mxu0
    %v225 = vadd.f32 %v212, %v224
    %v226 = vpop.f32.mrf.mxu0
    %227 = vdwg.mxu0
    %v228 = vmul.f32 %v225, 0.5
    %v229 = vtanh.pop %v228
    %v230 = vmul.f32 %v229, 0.5
    %v231 = vadd.f32 %v230, 0.5
    %v232 = vpack.c.bf16 %v231, %v231
    %v233 = vld [vmem:[#allocation7] sm:$0xff]
    %v234 = vld [vmem:[#allocation7 + $0x8] sm:$0xff]
    %v235 = vld [vmem:[#allocation7 + $0x10] sm:$0xff]
    %v236 = vld [vmem:[#allocation7 + $0x18] sm:$0xff]
    %v237 = vld [vmem:[#allocation7 + $0x20] sm:$0xff]
    %v238 = vld [vmem:[#allocation7 + $0x28] sm:$0xff]
    %v239 = vld [vmem:[#allocation7 + $0x30] sm:$0xff]
    %v240 = vld [vmem:[#allocation7 + $0x38] sm:$0xff]
    %v241 = vld [vmem:[#allocation7 + $0x40] sm:$0xff]
    %v242 = vld [vmem:[#allocation7 + $0x48] sm:$0xff]
    %v243 = vld [vmem:[#allocation7 + $0x50] sm:$0xff]
    %v244 = vld [vmem:[#allocation7 + $0x58] sm:$0xff]
    %v245 = vld [vmem:[#allocation7 + $0x60] sm:$0xff]
    %v246 = vld [vmem:[#allocation7 + $0x68] sm:$0xff]
    %v247 = vld [vmem:[#allocation7 + $0x70] sm:$0xff]
    %v248 = vld [vmem:[#allocation7 + $0x78] sm:$0xff]
    %v249 = vld [vmem:[%s4] sm:$0x3]
    %v251 = vperm.slane %v249, 0
    %v252 = vperm.slane %v249, 1
    %v271 = vunpack.c.l.b16 %v233
    %v272 = vunpack.c.h.b16 %v233
    %v273 = vunpack.c.l.b16 %v234
    %v274 = vunpack.c.h.b16 %v234
    %v275 = vunpack.c.l.b16 %v235
    %v276 = vunpack.c.h.b16 %v235
    %v277 = vunpack.c.l.b16 %v236
    %v278 = vunpack.c.h.b16 %v236
    %v279 = vunpack.c.l.b16 %v237
    %v280 = vunpack.c.h.b16 %v237
    %v281 = vunpack.c.l.b16 %v238
    %v282 = vunpack.c.h.b16 %v238
    %v283 = vunpack.c.l.b16 %v239
    %v284 = vunpack.c.h.b16 %v239
    %v285 = vunpack.c.l.b16 %v240
    %v286 = vunpack.c.h.b16 %v240
    %v287 = vunpack.c.l.b16 %v241
    %v288 = vunpack.c.h.b16 %v241
    %v289 = vunpack.c.l.b16 %v242
    %v290 = vunpack.c.h.b16 %v242
    %v291 = vunpack.c.l.b16 %v243
    %v292 = vunpack.c.h.b16 %v243
    %v293 = vunpack.c.l.b16 %v244
    %v294 = vunpack.c.h.b16 %v244
    %v295 = vunpack.c.l.b16 %v245
    %v296 = vunpack.c.h.b16 %v245
    %v297 = vunpack.c.l.b16 %v246
    %v298 = vunpack.c.h.b16 %v246
    %v299 = vunpack.c.l.b16 %v247
    %v300 = vunpack.c.h.b16 %v247
    %v301 = vunpack.c.l.b16 %v248
    %v302 = vunpack.c.h.b16 %v248
    %v303 = vpack.c.b16 %v273, %v271
    %v304 = vpack.c.b16 %v274, %v272
    %v305 = vpack.c.b16 %v277, %v275
    %v306 = vpack.c.b16 %v278, %v276
    %v307 = vpack.c.b16 %v281, %v279
    %v308 = vpack.c.b16 %v282, %v280
    %v309 = vpack.c.b16 %v285, %v283
    %v310 = vpack.c.b16 %v286, %v284
    %v311 = vpack.c.b16 %v289, %v287
    %v312 = vpack.c.b16 %v290, %v288
    %v313 = vpack.c.b16 %v293, %v291
    %v314 = vpack.c.b16 %v294, %v292
    %v315 = vpack.c.b16 %v297, %v295
    %v316 = vpack.c.b16 %v298, %v296
    %v317 = vpack.c.b16 %v301, %v299
    %v318 = vpack.c.b16 %v302, %v300
    %335 = vmatpush.bf16.msra.mxu0 %v317
    %336 = vmatpush.bf16.msra.mxu0 %v315
    %337 = vmatpush.bf16.msra.mxu0 %v313
    %338 = vmatpush.bf16.msra.mxu0 %v311
    %339 = vmatpush.bf16.msra.mxu0 %v309
    %340 = vmatpush.bf16.msra.mxu0 %v307
    %341 = vmatpush.bf16.msra.mxu0 %v305
    %342 = vmatpush.bf16.msra.mxu0 %v303
    %343 = vmatmul.bf16.gmra.mxu0 %v232
    %v344 = vpop.f32.mrf.mxu0
    %v345 = vadd.f32 %v251, %v344
    %v346 = vpop.f32.mrf.mxu0
    %347 = vdwg.mxu0
    %348 = vmatpush.bf16.msra.mxu0 %v318
    %349 = vmatpush.bf16.msra.mxu0 %v316
    %350 = vmatpush.bf16.msra.mxu0 %v314
    %351 = vmatpush.bf16.msra.mxu0 %v312
    %352 = vmatpush.bf16.msra.mxu0 %v310
    %353 = vmatpush.bf16.msra.mxu0 %v308
    %354 = vmatpush.bf16.msra.mxu0 %v306
    %355 = vmatpush.bf16.msra.mxu0 %v304
    %356 = vmatmul.bf16.gmra.mxu0 %v232
    %v357 = vpop.f32.mrf.mxu0
    %v358 = vadd.f32 %v252, %v357
    %v359 = vpop.f32.mrf.mxu0
    %360 = vdwg.mxu0
    %v361 = vmul.f32 %v345, 0.5
    %v362 = vmul.f32 %v358, 0.5
    %v363 = vtanh.pop %v361
    %v364 = vtanh.pop %v362
    %v365 = vmul.f32 %v363, 0.5
    %v366 = vmul.f32 %v364, 0.5
    %v367 = vadd.f32 %v365, 0.5
    %v368 = vadd.f32 %v366, 0.5
    %369 = vst [vmem:[#allocation8] sm:$0xff] %v367
    %370 = vst [vmem:[#allocation8 + $0x8] sm:$0xff] %v368
    // Predicated region
    $region34: #{tpu_custom_call.1} parent=1 // pred_check
      _
    $region35: #{tpu_custom_call.1} parent=1 // pred_check_branch
      %372 = sbr.rel (0) target = $region37
    $region36: #{tpu_custom_call.1} parent=1 // pred_region
      %374 = vsyncadd [#allocation4], 0
      %s376 = sshll.u32 [#allocation8], 4
      %s377 = int_to_ptr.vmem [resolvable:$true] %s376
      %s378 = sshll.u32 %s5, 4
      %s379 = int_to_ptr.hbm [resolvable:$true] %s378
      %381 = dma.vmem_to_hbm [thread:$0]  %s377, 256, %s379, [#allocation4]
    $region37: #{tpu_custom_call.1} parent=1 // pred_fallthru
      _
    // Predicated region
    $region38: #{tpu_custom_call.1} parent=1 // pred_check
      _
    $region39: #{tpu_custom_call.1} parent=1 // pred_check_branch
      %383 = sbr.rel (0) target = $region41
    $region40: #{tpu_custom_call.1} parent=1 // pred_region
      %385 = dma.done [#allocation4], 256
    $region41: #{tpu_custom_call.1} parent=1 // pred_fallthru
      _
    %386 = vsyncpa [#allocation3], 1
    %387 = vsyncpa [#allocation6], 1
    %388 = vsyncpa [#allocation4], 1

</llo_original>
